<compile_context>
chip_gen: v7x
topology: tpu7x:2x2x1
jax: 0.10.0
libtpu: 0.0.40
codegen_flags: <defaults>
</compile_context>

<pallas_src>
import jax
import jax.numpy as jnp
from jax.experimental import pallas as pl
from jax.experimental.pallas import tpu as pltpu

BN_EPS = 1e-5
NORM_EPS = 1e-12


def _batchnorm_relu(h, gamma, beta):
    # BatchNorm1d in training mode: batch mean, biased variance, eps=1e-5.
    mean = jnp.mean(h, axis=0, keepdims=True)
    var = jnp.mean((h - mean) * (h - mean), axis=0, keepdims=True)
    h = (h - mean) * jax.lax.rsqrt(var + BN_EPS)
    h = h * gamma + beta
    return jnp.maximum(h, 0.0)  # ReLU


def embedding_kernel(x_ref,
                     w1_ref, gb1_ref,
                     w2_ref, gb2_ref,
                     w3_ref, b3_ref,
                     out_ref):
    # Layer 1: Linear (bias dropped -- cancelled by BN) -> BN -> ReLU
    x = x_ref[...].astype(jnp.bfloat16)
    h = jnp.dot(x, w1_ref[...], preferred_element_type=jnp.float32)
    h = _batchnorm_relu(h, gb1_ref[0:1, :], gb1_ref[1:2, :])

    # Layer 2: Linear (bias dropped) -> BN -> ReLU
    h = jnp.dot(h.astype(jnp.bfloat16), w2_ref[...],
                preferred_element_type=jnp.float32)
    h = _batchnorm_relu(h, gb2_ref[0:1, :], gb2_ref[1:2, :])

    # Output projection (bias kept -- no BN after it)
    e = jnp.dot(h.astype(jnp.bfloat16), w3_ref[...],
                preferred_element_type=jnp.float32) + b3_ref[...]

    # L2 normalize (F.normalize p=2, dim=1, eps=1e-12):
    #   e / max(||e||, eps) == e * rsqrt(max(||e||^2, eps^2))   (exact)
    sq = jnp.sum(e * e, axis=1, keepdims=True)
    out_ref[...] = e * jax.lax.rsqrt(jnp.maximum(sq, NORM_EPS * NORM_EPS))


def pack_params(params):
    """From the 'torch-like' f32 param tuple, build the kernel inputs:
    bf16 weights, packed [2, d] gamma/beta slabs, drop b1/b2 (cancelled by BN)."""
    (w1, b1, g1, be1, w2, b2, g2, be2, w3, b3) = params
    del b1, b2  # exactly cancelled by training-mode BatchNorm's mean subtract
    w1b = w1.astype(jnp.bfloat16)
    w2b = w2.astype(jnp.bfloat16)
    w3b = w3.astype(jnp.bfloat16)
    gb1 = jnp.concatenate([g1, be1], axis=0)   # [2, 512]
    gb2 = jnp.concatenate([g2, be2], axis=0)   # [2, 256]
    return (w1b, gb1, w2b, gb2, w3b, b3)


def embedding_network_forward(x, kernel_params):
    (w1b, gb1, w2b, gb2, w3b, b3) = kernel_params
    batch, in_dim = x.shape
    h1 = w1b.shape[1]
    h2 = w2b.shape[1]
    embed_dim = w3b.shape[1]

    vmem_spec = pl.BlockSpec(memory_space=pltpu.MemorySpace.VMEM)
    n_inputs = 7

    flops = 2 * batch * (in_dim * h1 + h1 * h2 + h2 * embed_dim)
    bytes_accessed = (
        2 * (in_dim * h1 + h1 * h2 + h2 * embed_dim)          # bf16 weights
        + 4 * (2 * h1 + 2 * h2 + embed_dim)                   # gb1, gb2, b3 (f32)
        + 4 * batch * (in_dim + embed_dim))                   # x in, out
    transcendentals = h1 + h2 + batch                          # BN rsqrt + norm rsqrt

    return pl.pallas_call(
        embedding_kernel,
        out_shape=jax.ShapeDtypeStruct((batch, embed_dim), jnp.float32),
        in_specs=[vmem_spec] * n_inputs,
        out_specs=vmem_spec,
        cost_estimate=pl.CostEstimate(
            flops=flops,
            transcendentals=transcendentals,
            bytes_accessed=bytes_accessed),
    )(x, w1b, gb1, w2b, gb2, w3b, b3)


def init_params(key, input_dim, hidden_dims, embed_dim):
    """Deterministic f32 params. Linear weights ~ N(0, 0.02), biases ~ N(0, 0.02)
    (non-zero on purpose, to exercise the 'pre-BN bias cancels' equivalence).
    BatchNorm gamma=1, beta=0 (PyTorch defaults). Weights stored [in, out]."""
    dims = [input_dim] + list(hidden_dims) + [embed_dim]
    keys = jax.random.split(key, 2 * (len(dims) - 1))
    params = []
    for i, (d_in, d_out) in enumerate(zip(dims[:-1], dims[1:])):
        w = jax.random.normal(keys[2 * i], (d_in, d_out), dtype=jnp.float32) * 0.02
        b = jax.random.normal(keys[2 * i + 1], (1, d_out), dtype=jnp.float32) * 0.02
        params.append(w)
        params.append(b)
        if i < len(dims) - 2:  # BN only on hidden layers
            params.append(jnp.ones((1, d_out), dtype=jnp.float32))   # gamma
            params.append(jnp.zeros((1, d_out), dtype=jnp.float32))  # beta
    return tuple(params)


def reference_forward(x, params):
    """Pure-JAX reference (f32 math, biases INCLUDED) matching the PyTorch
    module in training mode. Weights are rounded through bf16 so the
    comparison isolates kernel arithmetic rather than dtype policy."""
    (w1, b1, g1, be1, w2, b2, g2, be2, w3, b3) = params
    w1 = w1.astype(jnp.bfloat16).astype(jnp.float32)
    w2 = w2.astype(jnp.bfloat16).astype(jnp.float32)
    w3 = w3.astype(jnp.bfloat16).astype(jnp.float32)

    def bn_relu(h, g, be):
        mean = jnp.mean(h, axis=0, keepdims=True)
        var = jnp.mean((h - mean) ** 2, axis=0, keepdims=True)
        return jnp.maximum((h - mean) / jnp.sqrt(var + BN_EPS) * g + be, 0.0)

    h = bn_relu(x @ w1 + b1, g1, be1)
    h = bn_relu(h @ w2 + b2, g2, be2)
    e = h @ w3 + b3
    norm = jnp.sqrt(jnp.sum(e * e, axis=1, keepdims=True))
    return e / jnp.maximum(norm, NORM_EPS)


if __name__ == "__main__":
    key = jax.random.PRNGKey(0)
    k_x, k_p = jax.random.split(key)

    batch = 8
    input_dim = 64
    hidden_dims = [512, 256]
    embed_dim = 128

    x = jax.random.normal(k_x, (batch, input_dim), dtype=jnp.float32)
    params = init_params(k_p, input_dim, hidden_dims, embed_dim)
    kernel_params = pack_params(params)

    out = embedding_network_forward(x, kernel_params)
    out = jax.block_until_ready(out)

    ref = reference_forward(x, params)
    assert out.shape == (batch, embed_dim)
    # bf16 activations in the matmuls -> relaxed tolerance vs f32 reference
    assert jnp.allclose(out, ref, atol=2e-2, rtol=2e-2), "mismatch vs JAX reference"
    # rows must be unit-norm regardless of dtype policy
    assert jnp.allclose(jnp.linalg.norm(out, axis=1), 1.0, atol=1e-5)

    print("KERNEL_OK")
</pallas_src>

<mosaic_0001>
module attributes {stable_mosaic.version = 11 : i64} {
  func.func @embedding_kernel(%arg0: memref<8x64xf32, #tpu.memory_space<vmem>>, %arg1: memref<64x512xbf16, #tpu.memory_space<vmem>>, %arg2: memref<2x512xf32, #tpu.memory_space<vmem>>, %arg3: memref<512x256xbf16, #tpu.memory_space<vmem>>, %arg4: memref<2x256xf32, #tpu.memory_space<vmem>>, %arg5: memref<256x128xbf16, #tpu.memory_space<vmem>>, %arg6: memref<1x128xf32, #tpu.memory_space<vmem>>, %arg7: memref<8x128xf32, #tpu.memory_space<vmem>>) attributes {dimension_semantics = [], scalar_prefetch = 0 : i64, scratch_operands = 0 : i64, tpu.core_type = #tpu.core_type<tc>} {
    %c0 = arith.constant 0 : index
    %c0_0 = arith.constant 0 : index
    %0 = vector.load %arg0[%c0, %c0_0] : memref<8x64xf32, #tpu.memory_space<vmem>>, vector<8x64xf32>
    %1 = arith.truncf %0 : vector<8x64xf32> to vector<8x64xbf16>
    %c0_1 = arith.constant 0 : index
    %c0_2 = arith.constant 0 : index
    %2 = vector.load %arg1[%c0_1, %c0_2] : memref<64x512xbf16, #tpu.memory_space<vmem>>, vector<64x512xbf16>
    %cst = arith.constant dense<0.000000e+00> : vector<8x512xf32>
    %3 = tpu.matmul %1, %2, %cst {dimension_numbers = #tpu.dot_dimension_numbers<[1], [0], [0], [1], [0, 0, 1, 1], [], []>} : vector<8x64xbf16>, vector<64x512xbf16>, vector<8x512xf32> -> vector<8x512xf32>
    %c0_3 = arith.constant 0 : index
    %c0_4 = arith.constant 0 : index
    %4 = vector.load %arg2[%c0_3, %c0_4] : memref<2x512xf32, #tpu.memory_space<vmem>>, vector<1x512xf32>
    %c1 = arith.constant 1 : index
    %c0_5 = arith.constant 0 : index
    %5 = vector.load %arg2[%c1, %c0_5] : memref<2x512xf32, #tpu.memory_space<vmem>>, vector<1x512xf32>
    %cst_6 = arith.constant dense<0.000000e+00> : vector<512xf32>
    %6 = vector.multi_reduction <add>, %3, %cst_6 [0] : vector<8x512xf32> to vector<512xf32>
    %7 = vector.shape_cast %6 : vector<512xf32> to vector<1x512xf32>
    %cst_7 = arith.constant 8.000000e+00 : f32
    %8 = vector.broadcast %cst_7 : f32 to vector<1x512xf32>
    %9 = arith.divf %7, %8 : vector<1x512xf32>
    %10 = vector.broadcast %9 : vector<1x512xf32> to vector<8x512xf32>
    %11 = arith.subf %3, %10 : vector<8x512xf32>
    %12 = vector.broadcast %9 : vector<1x512xf32> to vector<8x512xf32>
    %13 = arith.subf %3, %12 : vector<8x512xf32>
    %14 = arith.mulf %11, %13 : vector<8x512xf32>
    %cst_8 = arith.constant dense<0.000000e+00> : vector<512xf32>
    %15 = vector.multi_reduction <add>, %14, %cst_8 [0] : vector<8x512xf32> to vector<512xf32>
    %16 = vector.shape_cast %15 : vector<512xf32> to vector<1x512xf32>
    %cst_9 = arith.constant 8.000000e+00 : f32
    %17 = vector.broadcast %cst_9 : f32 to vector<1x512xf32>
    %18 = arith.divf %16, %17 : vector<1x512xf32>
    %19 = vector.broadcast %9 : vector<1x512xf32> to vector<8x512xf32>
    %20 = arith.subf %3, %19 : vector<8x512xf32>
    %cst_10 = arith.constant 9.99999974E-6 : f32
    %21 = vector.broadcast %cst_10 : f32 to vector<1x512xf32>
    %22 = arith.addf %18, %21 : vector<1x512xf32>
    %23 = math.rsqrt %22 : vector<1x512xf32>
    %24 = vector.broadcast %23 : vector<1x512xf32> to vector<8x512xf32>
    %25 = arith.mulf %20, %24 : vector<8x512xf32>
    %26 = vector.broadcast %4 : vector<1x512xf32> to vector<8x512xf32>
    %27 = arith.mulf %25, %26 : vector<8x512xf32>
    %28 = vector.broadcast %5 : vector<1x512xf32> to vector<8x512xf32>
    %29 = arith.addf %27, %28 : vector<8x512xf32>
    %cst_11 = arith.constant 0.000000e+00 : f32
    %30 = vector.broadcast %cst_11 : f32 to vector<8x512xf32>
    %31 = arith.maximumf %29, %30 : vector<8x512xf32>
    %32 = arith.truncf %31 : vector<8x512xf32> to vector<8x512xbf16>
    %c0_12 = arith.constant 0 : index
    %c0_13 = arith.constant 0 : index
    %33 = vector.load %arg3[%c0_12, %c0_13] : memref<512x256xbf16, #tpu.memory_space<vmem>>, vector<512x256xbf16>
    %cst_14 = arith.constant dense<0.000000e+00> : vector<8x256xf32>
    %34 = tpu.matmul %32, %33, %cst_14 {dimension_numbers = #tpu.dot_dimension_numbers<[1], [0], [0], [1], [0, 0, 1, 1], [], []>} : vector<8x512xbf16>, vector<512x256xbf16>, vector<8x256xf32> -> vector<8x256xf32>
    %c0_15 = arith.constant 0 : index
    %c0_16 = arith.constant 0 : index
    %35 = vector.load %arg4[%c0_15, %c0_16] : memref<2x256xf32, #tpu.memory_space<vmem>>, vector<1x256xf32>
    %c1_17 = arith.constant 1 : index
    %c0_18 = arith.constant 0 : index
    %36 = vector.load %arg4[%c1_17, %c0_18] : memref<2x256xf32, #tpu.memory_space<vmem>>, vector<1x256xf32>
    %cst_19 = arith.constant dense<0.000000e+00> : vector<256xf32>
    %37 = vector.multi_reduction <add>, %34, %cst_19 [0] : vector<8x256xf32> to vector<256xf32>
    %38 = vector.shape_cast %37 : vector<256xf32> to vector<1x256xf32>
    %cst_20 = arith.constant 8.000000e+00 : f32
    %39 = vector.broadcast %cst_20 : f32 to vector<1x256xf32>
    %40 = arith.divf %38, %39 : vector<1x256xf32>
    %41 = vector.broadcast %40 : vector<1x256xf32> to vector<8x256xf32>
    %42 = arith.subf %34, %41 : vector<8x256xf32>
    %43 = vector.broadcast %40 : vector<1x256xf32> to vector<8x256xf32>
    %44 = arith.subf %34, %43 : vector<8x256xf32>
    %45 = arith.mulf %42, %44 : vector<8x256xf32>
    %cst_21 = arith.constant dense<0.000000e+00> : vector<256xf32>
    %46 = vector.multi_reduction <add>, %45, %cst_21 [0] : vector<8x256xf32> to vector<256xf32>
    %47 = vector.shape_cast %46 : vector<256xf32> to vector<1x256xf32>
    %cst_22 = arith.constant 8.000000e+00 : f32
    %48 = vector.broadcast %cst_22 : f32 to vector<1x256xf32>
    %49 = arith.divf %47, %48 : vector<1x256xf32>
    %50 = vector.broadcast %40 : vector<1x256xf32> to vector<8x256xf32>
    %51 = arith.subf %34, %50 : vector<8x256xf32>
    %cst_23 = arith.constant 9.99999974E-6 : f32
    %52 = vector.broadcast %cst_23 : f32 to vector<1x256xf32>
    %53 = arith.addf %49, %52 : vector<1x256xf32>
    %54 = math.rsqrt %53 : vector<1x256xf32>
    %55 = vector.broadcast %54 : vector<1x256xf32> to vector<8x256xf32>
    %56 = arith.mulf %51, %55 : vector<8x256xf32>
    %57 = vector.broadcast %35 : vector<1x256xf32> to vector<8x256xf32>
    %58 = arith.mulf %56, %57 : vector<8x256xf32>
    %59 = vector.broadcast %36 : vector<1x256xf32> to vector<8x256xf32>
    %60 = arith.addf %58, %59 : vector<8x256xf32>
    %cst_24 = arith.constant 0.000000e+00 : f32
    %61 = vector.broadcast %cst_24 : f32 to vector<8x256xf32>
    %62 = arith.maximumf %60, %61 : vector<8x256xf32>
    %63 = arith.truncf %62 : vector<8x256xf32> to vector<8x256xbf16>
    %c0_25 = arith.constant 0 : index
    %c0_26 = arith.constant 0 : index
    %64 = vector.load %arg5[%c0_25, %c0_26] : memref<256x128xbf16, #tpu.memory_space<vmem>>, vector<256x128xbf16>
    %cst_27 = arith.constant dense<0.000000e+00> : vector<8x128xf32>
    %65 = tpu.matmul %63, %64, %cst_27 {dimension_numbers = #tpu.dot_dimension_numbers<[1], [0], [0], [1], [0, 0, 1, 1], [], []>} : vector<8x256xbf16>, vector<256x128xbf16>, vector<8x128xf32> -> vector<8x128xf32>
    %c0_28 = arith.constant 0 : index
    %c0_29 = arith.constant 0 : index
    %66 = vector.load %arg6[%c0_28, %c0_29] : memref<1x128xf32, #tpu.memory_space<vmem>>, vector<1x128xf32>
    %67 = vector.broadcast %66 : vector<1x128xf32> to vector<8x128xf32>
    %68 = arith.addf %65, %67 : vector<8x128xf32>
    %69 = arith.mulf %68, %68 : vector<8x128xf32>
    %cst_30 = arith.constant dense<0.000000e+00> : vector<8xf32>
    %70 = vector.multi_reduction <add>, %69, %cst_30 [1] : vector<8x128xf32> to vector<8xf32>
    %71 = vector.shape_cast %70 : vector<8xf32> to vector<8x1xf32>
    %cst_31 = arith.constant 1.000000e-24 : f32
    %72 = vector.broadcast %cst_31 : f32 to vector<8x1xf32>
    %73 = arith.maximumf %71, %72 : vector<8x1xf32>
    %74 = math.rsqrt %73 : vector<8x1xf32>
    %75 = vector.broadcast %74 : vector<8x1xf32> to vector<8x128xf32>
    %76 = arith.mulf %68, %75 : vector<8x128xf32>
    %c0_32 = arith.constant 0 : index
    %c0_33 = arith.constant 0 : index
    %77 = vector.load %arg7[%c0_32, %c0_33] : memref<8x128xf32, #tpu.memory_space<vmem>>, vector<8x128xf32>
    tpu.vector_store %arg7[%c0_32, %c0_33], %76 {strides = array<i32>} : memref<8x128xf32, #tpu.memory_space<vmem>>, vector<8x128xf32>,
    return
  }
}

</mosaic_0001>

<llo_original>
// kernel: tpu_custom_call.1
$region0: #{tpu_custom_call.1}
  #allocation0 [shape = 'u32[]', space=smem, size = 0x4, offset = 0x4, fixed_abs, tag = 'smem constant byte address 0x4 - core index']
  #allocation1 [shape = 'u32[144,128]{1,0:T(1,128)}', space=vmem, size = 0x12000, scoped, tag = 'internal scratch']
  %s0 = inlined_call_operand.hbm [shape: f32[8,64], index: 0, kind: input, shape index: {}]
  %s1 = inlined_call_operand.hbm [shape: bf16[64,512], index: 1, kind: input, shape index: {}]
  %s2 = inlined_call_operand.hbm [shape: f32[2,512], index: 2, kind: input, shape index: {}]
  %s3 = inlined_call_operand.hbm [shape: bf16[512,256], index: 3, kind: input, shape index: {}]
  %s4 = inlined_call_operand.vmem [shape: f32[2,256], index: 4, kind: input, shape index: {}]
  %s5 = inlined_call_operand.hbm [shape: bf16[256,128], index: 5, kind: input, shape index: {}]
  %s6 = inlined_call_operand.vmem [shape: f32[1,128], index: 6, kind: input, shape index: {}]
  %s7 = inlined_call_operand.hbm [shape: f32[8,128], index: 7, kind: output, shape index: {}]
  %s8 = sld [smem:[#allocation0]]
  $region58: #{tpu_custom_call.1} parent=0
    _
  %s10 = ssub.s32 1, %s8
  %s11 = scalar_select 0, %s10, %s8
  $region1: #{tpu_custom_call.1} parent=0
    #allocation2 [shape = 'u8[4096]{0}', space=vmem, size = 0x1000, scoped, tag = 'input window, operand 0, single buffered']
    #allocation3 [shape = 's32[1]{0}', space=sflag, size = 0x4, scoped, tag = 'scoped memory for tpu_custom_call.1']
    #allocation4 [shape = 's32[1]{0}', space=sflag, size = 0x4, scoped, tag = 'scoped memory for tpu_custom_call.1']
    #allocation5 [shape = 'u8[65536]{0}', space=vmem, size = 0x10000, scoped, tag = 'input window, operand 1, single buffered']
    #allocation6 [shape = 's32[1]{0}', space=sflag, size = 0x4, scoped, tag = 'scoped memory for tpu_custom_call.1']
    #allocation7 [shape = 'u8[4096]{0}', space=vmem, size = 0x1000, scoped, tag = 'input window, operand 2, single buffered']
    #allocation8 [shape = 'u8[262144]{0}', space=vmem, size = 0x40000, scoped, tag = 'input window, operand 3, single buffered']
    #allocation9 [shape = 's32[1]{0}', space=sflag, size = 0x4, scoped, tag = 'scoped memory for tpu_custom_call.1']
    #allocation10 [shape = 'u8[65536]{0}', space=vmem, size = 0x10000, scoped, tag = 'input window, operand 5, single buffered']
    #allocation11 [shape = 'u8[4096]{0}', space=vmem, size = 0x1000, scoped, tag = 'output window, operand 0, single buffered']
    %12 = vsyncpa [#allocation3], 0
    %13 = vsyncpa [#allocation6], 0
    %14 = vsyncpa [#allocation9], 0
    %15 = vsyncpa [#allocation4], 0
    // Predicated region
    $region2: #{tpu_custom_call.1} parent=1 // pred_check
      _
    $region3: #{tpu_custom_call.1} parent=1 // pred_check_branch
      %17 = sbr.rel (0) target = $region5
    $region4: #{tpu_custom_call.1} parent=1 // pred_region
      %s19 = ssub.s32 128, 128
      %20 = vsyncadd [#allocation3], %s19
      %s22 = sshll.u32 [#allocation2], 4
      %s23 = int_to_ptr.vmem [resolvable:$true] %s22
      %25 = dma.hbm_to_vmem [thread:$0]  %s0, 128, %s23, [#allocation3]
    $region5: #{tpu_custom_call.1} parent=1 // pred_fallthru
      _
    // Predicated region
    $region6: #{tpu_custom_call.1} parent=1 // pred_check
      _
    $region7: #{tpu_custom_call.1} parent=1 // pred_check_branch
      %27 = sbr.rel (0) target = $region9
    $region8: #{tpu_custom_call.1} parent=1 // pred_region
      %s29 = ssub.s32 2048, 2048
      %30 = vsyncadd [#allocation6], %s29
      %s31 = sshll.u32 [#allocation5], 4
      %s32 = int_to_ptr.vmem [resolvable:$true] %s31
      %37 = dma.hbm_to_vmem [thread:$0]  %s1, 2048, %s32, [#allocation6], 256, 256, 16
    $region9: #{tpu_custom_call.1} parent=1 // pred_fallthru
      _
    // Predicated region
    $region10: #{tpu_custom_call.1} parent=1 // pred_check
      _
    $region11: #{tpu_custom_call.1} parent=1 // pred_check_branch
      %39 = sbr.rel (0) target = $region13
    $region12: #{tpu_custom_call.1} parent=1 // pred_region
      %s41 = ssub.s32 128, 128
      %42 = vsyncadd [#allocation6], %s41
      %s44 = sshll.u32 [#allocation7], 4
      %s45 = int_to_ptr.vmem [resolvable:$true] %s44
      %47 = dma.hbm_to_vmem [thread:$0]  %s2, 128, %s45, [#allocation6]
    $region13: #{tpu_custom_call.1} parent=1 // pred_fallthru
      _
    // Predicated region
    $region14: #{tpu_custom_call.1} parent=1 // pred_check
      _
    $region15: #{tpu_custom_call.1} parent=1 // pred_check_branch
      %49 = sbr.rel (0) target = $region17
    $region16: #{tpu_custom_call.1} parent=1 // pred_region
      %s51 = ssub.s32 8192, 8192
      %52 = vsyncadd [#allocation9], %s51
      %s53 = sshll.u32 [#allocation8], 4
      %s54 = int_to_ptr.vmem [resolvable:$true] %s53
      %59 = dma.hbm_to_vmem [thread:$0]  %s3, 8192, %s54, [#allocation9], 128, 128, 8
    $region17: #{tpu_custom_call.1} parent=1 // pred_fallthru
      _
    // Predicated region
    $region18: #{tpu_custom_call.1} parent=1 // pred_check
      _
    $region19: #{tpu_custom_call.1} parent=1 // pred_check_branch
      %61 = sbr.rel (0) target = $region21
    $region20: #{tpu_custom_call.1} parent=1 // pred_region
      _
    $region21: #{tpu_custom_call.1} parent=1 // pred_fallthru
      _
    // Predicated region
    $region22: #{tpu_custom_call.1} parent=1 // pred_check
      _
    $region23: #{tpu_custom_call.1} parent=1 // pred_check_branch
      %63 = sbr.rel (0) target = $region25
    $region24: #{tpu_custom_call.1} parent=1 // pred_region
      %s65 = ssub.s32 2048, 2048
      %66 = vsyncadd [#allocation9], %s65
      %s67 = sshll.u32 [#allocation10], 4
      %s68 = int_to_ptr.vmem [resolvable:$true] %s67
      %73 = dma.hbm_to_vmem [thread:$0]  %s5, 2048, %s68, [#allocation9], 64, 64, 4
    $region25: #{tpu_custom_call.1} parent=1 // pred_fallthru
      _
    // Predicated region
    $region26: #{tpu_custom_call.1} parent=1 // pred_check
      _
    $region27: #{tpu_custom_call.1} parent=1 // pred_check_branch
      %75 = sbr.rel (0) target = $region29
    $region28: #{tpu_custom_call.1} parent=1 // pred_region
      _
    $region29: #{tpu_custom_call.1} parent=1 // pred_fallthru
      _
    // Predicated region
    $region30: #{tpu_custom_call.1} parent=1 // pred_check
      _
    $region31: #{tpu_custom_call.1} parent=1 // pred_check_branch
      %77 = sbr.rel (0) target = $region33
    $region32: #{tpu_custom_call.1} parent=1 // pred_region
      %78 = dma.done [#allocation3], 128
    $region33: #{tpu_custom_call.1} parent=1 // pred_fallthru
      _
    // Predicated region
    $region34: #{tpu_custom_call.1} parent=1 // pred_check
      _
    $region35: #{tpu_custom_call.1} parent=1 // pred_check_branch
      %80 = sbr.rel (0) target = $region37
    $region36: #{tpu_custom_call.1} parent=1 // pred_region
      %81 = dma.done [#allocation6], 2048
    $region37: #{tpu_custom_call.1} parent=1 // pred_fallthru
      _
    // Predicated region
    $region38: #{tpu_custom_call.1} parent=1 // pred_check
      _
    $region39: #{tpu_custom_call.1} parent=1 // pred_check_branch
      %83 = sbr.rel (0) target = $region41
    $region40: #{tpu_custom_call.1} parent=1 // pred_region
      %84 = dma.done [#allocation6], 128
    $region41: #{tpu_custom_call.1} parent=1 // pred_fallthru
      _
    // Predicated region
    $region42: #{tpu_custom_call.1} parent=1 // pred_check
      _
    $region43: #{tpu_custom_call.1} parent=1 // pred_check_branch
      %86 = sbr.rel (0) target = $region45
    $region44: #{tpu_custom_call.1} parent=1 // pred_region
      %87 = dma.done [#allocation9], 8192
    $region45: #{tpu_custom_call.1} parent=1 // pred_fallthru
      _
    // Predicated region
    $region46: #{tpu_custom_call.1} parent=1 // pred_check
      _
    $region47: #{tpu_custom_call.1} parent=1 // pred_check_branch
      %89 = sbr.rel (0) target = $region49
    $region48: #{tpu_custom_call.1} parent=1 // pred_region
      %90 = dma.done [#allocation9], 2048
    $region49: #{tpu_custom_call.1} parent=1 // pred_fallthru
      _
    %v92 = vld [vmem:[#allocation2] sm:$0xff]
    %v93 = vpack.c.bf16 %v92, %v92
    %v94 = vld [vmem:[#allocation5] sm:$0xff]
    %v95 = vld [vmem:[#allocation5 + $0x8] sm:$0xff]
    %v96 = vld [vmem:[#allocation5 + $0x10] sm:$0xff]
    %v97 = vld [vmem:[#allocation5 + $0x18] sm:$0xff]
    %v98 = vld [vmem:[#allocation5 + $0x20] sm:$0xff]
    %v99 = vld [vmem:[#allocation5 + $0x28] sm:$0xff]
    %v100 = vld [vmem:[#allocation5 + $0x30] sm:$0xff]
    %v101 = vld [vmem:[#allocation5 + $0x38] sm:$0xff]
    %v102 = vld [vmem:[#allocation5 + $0x40] sm:$0xff]
    %v103 = vld [vmem:[#allocation5 + $0x48] sm:$0xff]
    %v104 = vld [vmem:[#allocation5 + $0x50] sm:$0xff]
    %v105 = vld [vmem:[#allocation5 + $0x58] sm:$0xff]
    %v106 = vld [vmem:[#allocation5 + $0x60] sm:$0xff]
    %v107 = vld [vmem:[#allocation5 + $0x68] sm:$0xff]
    %v108 = vld [vmem:[#allocation5 + $0x70] sm:$0xff]
    %v109 = vld [vmem:[#allocation5 + $0x78] sm:$0xff]
    %v126 = vunpack.c.l.b16 %v94
    %v127 = vunpack.c.h.b16 %v94
    %v128 = vunpack.c.l.b16 %v95
    %v129 = vunpack.c.h.b16 %v95
    %v130 = vunpack.c.l.b16 %v96
    %v131 = vunpack.c.h.b16 %v96
    %v132 = vunpack.c.l.b16 %v97
    %v133 = vunpack.c.h.b16 %v97
    %v134 = vunpack.c.l.b16 %v98
    %v135 = vunpack.c.h.b16 %v98
    %v136 = vunpack.c.l.b16 %v99
    %v137 = vunpack.c.h.b16 %v99
    %v138 = vunpack.c.l.b16 %v100
    %v139 = vunpack.c.h.b16 %v100
    %v140 = vunpack.c.l.b16 %v101
    %v141 = vunpack.c.h.b16 %v101
    %v142 = vunpack.c.l.b16 %v102
    %v143 = vunpack.c.h.b16 %v102
    %v144 = vunpack.c.l.b16 %v103
    %v145 = vunpack.c.h.b16 %v103
    %v146 = vunpack.c.l.b16 %v104
    %v147 = vunpack.c.h.b16 %v104
    %v148 = vunpack.c.l.b16 %v105
    %v149 = vunpack.c.h.b16 %v105
    %v150 = vunpack.c.l.b16 %v106
    %v151 = vunpack.c.h.b16 %v106
    %v152 = vunpack.c.l.b16 %v107
    %v153 = vunpack.c.h.b16 %v107
    %v154 = vunpack.c.l.b16 %v108
    %v155 = vunpack.c.h.b16 %v108
    %v156 = vunpack.c.l.b16 %v109
    %v157 = vunpack.c.h.b16 %v109
    %v158 = vpack.c.b16 %v130, %v126
    %v159 = vpack.c.b16 %v131, %v127
    %v160 = vpack.c.b16 %v132, %v128
    %v161 = vpack.c.b16 %v133, %v129
    %v162 = vpack.c.b16 %v138, %v134
    %v163 = vpack.c.b16 %v139, %v135
    %v164 = vpack.c.b16 %v140, %v136
    %v165 = vpack.c.b16 %v141, %v137
    %v166 = vpack.c.b16 %v146, %v142
    %v167 = vpack.c.b16 %v147, %v143
    %v168 = vpack.c.b16 %v148, %v144
    %v169 = vpack.c.b16 %v149, %v145
    %v170 = vpack.c.b16 %v154, %v150
    %v171 = vpack.c.b16 %v155, %v151
    %v172 = vpack.c.b16 %v156, %v152
    %v173 = vpack.c.b16 %v157, %v153
    %vm190 = vcmask 523264
    %v192 = vsel %vm190, %v93, 0
    %194 = vmatprep.subr.bf16.mxu0 %v159
    %195 = vmatpush1.bf16.msra.mxu0 %v158
    %196 = vmatprep.subr.bf16.mxu0 %v163
    %197 = vmatpush1.bf16.msra.mxu0 %v162
    %198 = vmatprep.subr.bf16.mxu0 %v167
    %199 = vmatpush1.bf16.msra.mxu0 %v166
    %200 = vmatprep.subr.bf16.mxu0 %v171
    %201 = vmatpush1.bf16.msra.mxu0 %v170
    %202 = vmatprep.subr.bf16.mxu0 0
    %203 = vmatpush1.bf16.msra.mxu0 0
    %204 = vmatprep.subr.bf16.mxu0 0
    %205 = vmatpush1.bf16.msra.mxu0 0
    %206 = vmatprep.subr.bf16.mxu0 0
    %207 = vmatpush1.bf16.msra.mxu0 0
    %208 = vmatprep.subr.bf16.mxu0 0
    %209 = vmatpush1.bf16.msra.mxu0 0
    %210 = vmatprep.subr.bf16.mxu0 0
    %211 = vmatpush1.bf16.msra.mxu0 0
    %212 = vmatprep.subr.bf16.mxu0 0
    %213 = vmatpush1.bf16.msra.mxu0 0
    %214 = vmatprep.subr.bf16.mxu0 0
    %215 = vmatpush1.bf16.msra.mxu0 0
    %216 = vmatprep.subr.bf16.mxu0 0
    %217 = vmatpush1.bf16.msra.mxu0 0
    %218 = vmatprep.subr.bf16.mxu0 0
    %219 = vmatpush1.bf16.msra.mxu0 0
    %220 = vmatprep.subr.bf16.mxu0 0
    %221 = vmatpush1.bf16.msra.mxu0 0
    %222 = vmatprep.subr.bf16.mxu0 0
    %223 = vmatpush1.bf16.msra.mxu0 0
    %224 = vmatprep.subr.bf16.mxu0 0
    %225 = vmatpush1.bf16.msra.mxu0 0
    %226 = vmatprep.mubr.bf16.mxu0 0
    %227 = vmatmul.mubr.bf16.gmra.mrb[0].mxu0 %v192
    %v228 = vpop.f32.mrb[0].mxu0
    %v229 = vadd.f32 0.0, %v228
    %v230 = vpop.f32.mrb[0].mxu0
    %v231 = vadd.f32 0.0, %v230
    %v232 = vpop.f32.mrb[0].mxu0
    %v233 = vpop.f32.mrb[0].mxu0
    %234 = vdwg.mxu0
    %235 = vmatprep.subr.bf16.mxu0 %v161
    %236 = vmatpush1.bf16.msra.mxu0 %v160
    %237 = vmatprep.subr.bf16.mxu0 %v165
    %238 = vmatpush1.bf16.msra.mxu0 %v164
    %239 = vmatprep.subr.bf16.mxu0 %v169
    %240 = vmatpush1.bf16.msra.mxu0 %v168
    %241 = vmatprep.subr.bf16.mxu0 %v173
    %242 = vmatpush1.bf16.msra.mxu0 %v172
    %243 = vmatprep.subr.bf16.mxu0 0
    %244 = vmatpush1.bf16.msra.mxu0 0
    %245 = vmatprep.subr.bf16.mxu0 0
    %246 = vmatpush1.bf16.msra.mxu0 0
    %247 = vmatprep.subr.bf16.mxu0 0
    %248 = vmatpush1.bf16.msra.mxu0 0
    %249 = vmatprep.subr.bf16.mxu0 0
    %250 = vmatpush1.bf16.msra.mxu0 0
    %251 = vmatprep.subr.bf16.mxu0 0
    %252 = vmatpush1.bf16.msra.mxu0 0
    %253 = vmatprep.subr.bf16.mxu0 0
    %254 = vmatpush1.bf16.msra.mxu0 0
    %255 = vmatprep.subr.bf16.mxu0 0
    %256 = vmatpush1.bf16.msra.mxu0 0
    %257 = vmatprep.subr.bf16.mxu0 0
    %258 = vmatpush1.bf16.msra.mxu0 0
    %259 = vmatprep.subr.bf16.mxu0 0
    %260 = vmatpush1.bf16.msra.mxu0 0
    %261 = vmatprep.subr.bf16.mxu0 0
    %262 = vmatpush1.bf16.msra.mxu0 0
    %263 = vmatprep.subr.bf16.mxu0 0
    %264 = vmatpush1.bf16.msra.mxu0 0
    %265 = vmatprep.subr.bf16.mxu0 0
    %266 = vmatpush1.bf16.msra.mxu0 0
    %267 = vmatprep.mubr.bf16.mxu0 0
    %268 = vmatmul.mubr.bf16.gmra.mrb[0].mxu0 %v192
    %v269 = vpop.f32.mrb[0].mxu0
    %v270 = vadd.f32 0.0, %v269
    %v271 = vpop.f32.mrb[0].mxu0
    %v272 = vadd.f32 0.0, %v271
    %v273 = vpop.f32.mrb[0].mxu0
    %v274 = vpop.f32.mrb[0].mxu0
    %275 = vdwg.mxu0
    %v276 = vld [vmem:[#allocation7] ss:$2 sm:$0xf]
    %s277 = scalar_lea.vmem [#allocation7], 1
    %v278 = vld [vmem:[%s277] ss:$2 sm:$0xf]
    %v279 = vrot.slane %v229, 4
    %v280 = vadd.f32 %v229, %v279
    %v281 = vrot.slane %v280, 2
    %v282 = vadd.f32 %v280, %v281
    %v283 = vrot.slane %v282, 1
    %v284 = vadd.f32 %v282, %v283
    %v285 = vrot.slane %v231, 4
    %v286 = vadd.f32 %v231, %v285
    %v287 = vrot.slane %v286, 2
    %v288 = vadd.f32 %v286, %v287
    %v289 = vrot.slane %v288, 1
    %v290 = vadd.f32 %v288, %v289
    %v291 = vrot.slane %v270, 4
    %v292 = vadd.f32 %v270, %v291
    %v293 = vrot.slane %v292, 2
    %v294 = vadd.f32 %v292, %v293
    %v295 = vrot.slane %v294, 1
    %v296 = vadd.f32 %v294, %v295
    %v297 = vrot.slane %v272, 4
    %v298 = vadd.f32 %v272, %v297
    %v299 = vrot.slane %v298, 2
    %v300 = vadd.f32 %v298, %v299
    %v301 = vrot.slane %v300, 1
    %v302 = vadd.f32 %v300, %v301
    %v303 = vrcp.pop 8.0
    %v304 = vmul.f32 %v284, %v303
    %v305 = vmul.f32 %v290, %v303
    %v306 = vmul.f32 %v296, %v303
    %v307 = vmul.f32 %v302, %v303
    %v308 = vsub.f32 %v229, %v304
    %v309 = vsub.f32 %v231, %v305
    %v310 = vsub.f32 %v270, %v306
    %v311 = vsub.f32 %v272, %v307
    %v312 = vmul.f32 %v308, %v308
    %v313 = vmul.f32 %v309, %v309
    %v314 = vmul.f32 %v310, %v310
    %v315 = vmul.f32 %v311, %v311
    %v316 = vrot.slane %v312, 4
    %v317 = vadd.f32 %v312, %v316
    %v318 = vrot.slane %v317, 2
    %v319 = vadd.f32 %v317, %v318
    %v320 = vrot.slane %v319, 1
    %v321 = vadd.f32 %v319, %v320
    %v322 = vrot.slane %v313, 4
    %v323 = vadd.f32 %v313, %v322
    %v324 = vrot.slane %v323, 2
    %v325 = vadd.f32 %v323, %v324
    %v326 = vrot.slane %v325, 1
    %v327 = vadd.f32 %v325, %v326
    %v328 = vrot.slane %v314, 4
    %v329 = vadd.f32 %v314, %v328
    %v330 = vrot.slane %v329, 2
    %v331 = vadd.f32 %v329, %v330
    %v332 = vrot.slane %v331, 1
    %v333 = vadd.f32 %v331, %v332
    %v334 = vrot.slane %v315, 4
    %v335 = vadd.f32 %v315, %v334
    %v336 = vrot.slane %v335, 2
    %v337 = vadd.f32 %v335, %v336
    %v338 = vrot.slane %v337, 1
    %v339 = vadd.f32 %v337, %v338
    %v340 = vmul.f32 %v321, %v303
    %v341 = vmul.f32 %v327, %v303
    %v342 = vmul.f32 %v333, %v303
    %v343 = vmul.f32 %v339, %v303
    %v344 = vadd.f32 %v340, 1e-05
    %v345 = vadd.f32 %v341, 1e-05
    %v346 = vadd.f32 %v342, 1e-05
    %v347 = vadd.f32 %v343, 1e-05
    %v348 = vrsqrt.pop %v344
    %v349 = vrsqrt.pop %v345
    %v350 = vrsqrt.pop %v346
    %v351 = vrsqrt.pop %v347
    %v352 = vmul.f32 %v308, %v348
    %v353 = vmul.f32 %v309, %v349
    %v354 = vmul.f32 %v310, %v350
    %v355 = vmul.f32 %v311, %v351
    %v357 = vlaneseq
    %v358 = vshrl.u32 %v357, 7
    %v359 = vsub.s32 0, %v358
    %v360 = vrot.slane %v276, %v359
    %v361 = vlaneseq
    %v362 = vshrl.u32 %v361, 7
    %v363 = vsub.s32 1, %v362
    %v364 = vrot.slane %v276, %v363
    %v365 = vlaneseq
    %v366 = vshrl.u32 %v365, 7
    %v367 = vsub.s32 2, %v366
    %v368 = vrot.slane %v276, %v367
    %v369 = vlaneseq
    %v370 = vshrl.u32 %v369, 7
    %v371 = vsub.s32 3, %v370
    %v372 = vrot.slane %v276, %v371
    %v377 = vmul.f32 %v352, %v360
    %v378 = vmul.f32 %v353, %v364
    %v379 = vmul.f32 %v354, %v368
    %v380 = vmul.f32 %v355, %v372
    %v382 = vlaneseq
    %v383 = vshrl.u32 %v382, 7
    %v384 = vsub.s32 0, %v383
    %v385 = vrot.slane %v278, %v384
    %v386 = vlaneseq
    %v387 = vshrl.u32 %v386, 7
    %v388 = vsub.s32 1, %v387
    %v389 = vrot.slane %v278, %v388
    %v390 = vlaneseq
    %v391 = vshrl.u32 %v390, 7
    %v392 = vsub.s32 2, %v391
    %v393 = vrot.slane %v278, %v392
    %v394 = vlaneseq
    %v395 = vshrl.u32 %v394, 7
    %v396 = vsub.s32 3, %v395
    %v397 = vrot.slane %v278, %v396
    %v402 = vadd.f32 %v377, %v385
    %v403 = vadd.f32 %v378, %v389
    %v404 = vadd.f32 %v379, %v393
    %v405 = vadd.f32 %v380, %v397
    %v406 = vmax.f32 %v402, 0.0
    %v407 = vmax.f32 %v403, 0.0
    %v408 = vmax.f32 %v404, 0.0
    %v409 = vmax.f32 %v405, 0.0
    %v410 = vpack.c.bf16 %v406, %v406
    %v411 = vpack.c.bf16 %v407, %v407
    %v412 = vpack.c.bf16 %v408, %v408
    %v413 = vpack.c.bf16 %v409, %v409
    %v414 = vld [vmem:[#allocation8] sm:$0xff]
    %v415 = vld [vmem:[#allocation8 + $0x8] sm:$0xff]
    %v416 = vld [vmem:[#allocation8 + $0x10] sm:$0xff]
    %v417 = vld [vmem:[#allocation8 + $0x18] sm:$0xff]
    %v418 = vld [vmem:[#allocation8 + $0x20] sm:$0xff]
    %v419 = vld [vmem:[#allocation8 + $0x28] sm:$0xff]
    %v420 = vld [vmem:[#allocation8 + $0x30] sm:$0xff]
    %v421 = vld [vmem:[#allocation8 + $0x38] sm:$0xff]
    %v422 = vld [vmem:[#allocation8 + $0x40] sm:$0xff]
    %v423 = vld [vmem:[#allocation8 + $0x48] sm:$0xff]
    %v424 = vld [vmem:[#allocation8 + $0x50] sm:$0xff]
    %v425 = vld [vmem:[#allocation8 + $0x58] sm:$0xff]
    %v426 = vld [vmem:[#allocation8 + $0x60] sm:$0xff]
    %v427 = vld [vmem:[#allocation8 + $0x68] sm:$0xff]
    %v428 = vld [vmem:[#allocation8 + $0x70] sm:$0xff]
    %v429 = vld [vmem:[#allocation8 + $0x78] sm:$0xff]
    %v430 = vld [vmem:[#allocation8 + $0x80] sm:$0xff]
    %v431 = vld [vmem:[#allocation8 + $0x88] sm:$0xff]
    %v432 = vld [vmem:[#allocation8 + $0x90] sm:$0xff]
    %v433 = vld [vmem:[#allocation8 + $0x98] sm:$0xff]
    %v434 = vld [vmem:[#allocation8 + $0xa0] sm:$0xff]
    %v435 = vld [vmem:[#allocation8 + $0xa8] sm:$0xff]
    %v436 = vld [vmem:[#allocation8 + $0xb0] sm:$0xff]
    %v437 = vld [vmem:[#allocation8 + $0xb8] sm:$0xff]
    %v438 = vld [vmem:[#allocation8 + $0xc0] sm:$0xff]
    %v439 = vld [vmem:[#allocation8 + $0xc8] sm:$0xff]
    %v440 = vld [vmem:[#allocation8 + $0xd0] sm:$0xff]
    %v441 = vld [vmem:[#allocation8 + $0xd8] sm:$0xff]
    %v442 = vld [vmem:[#allocation8 + $0xe0] sm:$0xff]
    %v443 = vld [vmem:[#allocation8 + $0xe8] sm:$0xff]
    %v444 = vld [vmem:[#allocation8 + $0xf0] sm:$0xff]
    %v445 = vld [vmem:[#allocation8 + $0xf8] sm:$0xff]
    %v446 = vld [vmem:[#allocation8 + $0x100] sm:$0xff]
    %v447 = vld [vmem:[#allocation8 + $0x108] sm:$0xff]
    %v448 = vld [vmem:[#allocation8 + $0x110] sm:$0xff]
    %v449 = vld [vmem:[#allocation8 + $0x118] sm:$0xff]
    %v450 = vld [vmem:[#allocation8 + $0x120] sm:$0xff]
    %v451 = vld [vmem:[#allocation8 + $0x128] sm:$0xff]
    %v452 = vld [vmem:[#allocation8 + $0x130] sm:$0xff]
    %v453 = vld [vmem:[#allocation8 + $0x138] sm:$0xff]
    %v454 = vld [vmem:[#allocation8 + $0x140] sm:$0xff]
    %v455 = vld [vmem:[#allocation8 + $0x148] sm:$0xff]
    %v456 = vld [vmem:[#allocation8 + $0x150] sm:$0xff]
    %v457 = vld [vmem:[#allocation8 + $0x158] sm:$0xff]
    %v458 = vld [vmem:[#allocation8 + $0x160] sm:$0xff]
    %v459 = vld [vmem:[#allocation8 + $0x168] sm:$0xff]
    %v460 = vld [vmem:[#allocation8 + $0x170] sm:$0xff]
    %v461 = vld [vmem:[#allocation8 + $0x178] sm:$0xff]
    %v462 = vld [vmem:[#allocation8 + $0x180] sm:$0xff]
    %v463 = vld [vmem:[#allocation8 + $0x188] sm:$0xff]
    %v464 = vld [vmem:[#allocation8 + $0x190] sm:$0xff]
    %v465 = vld [vmem:[#allocation8 + $0x198] sm:$0xff]
    %v466 = vld [vmem:[#allocation8 + $0x1a0] sm:$0xff]
    %v467 = vld [vmem:[#allocation8 + $0x1a8] sm:$0xff]
    %v468 = vld [vmem:[#allocation8 + $0x1b0] sm:$0xff]
    %v469 = vld [vmem:[#allocation8 + $0x1b8] sm:$0xff]
    %v470 = vld [vmem:[#allocation8 + $0x1c0] sm:$0xff]
    %v471 = vld [vmem:[#allocation8 + $0x1c8] sm:$0xff]
    %v472 = vld [vmem:[#allocation8 + $0x1d0] sm:$0xff]
    %v473 = vld [vmem:[#allocation8 + $0x1d8] sm:$0xff]
    %v474 = vld [vmem:[#allocation8 + $0x1e0] sm:$0xff]
    %v475 = vld [vmem:[#allocation8 + $0x1e8] sm:$0xff]
    %v476 = vld [vmem:[#allocation8 + $0x1f0] sm:$0xff]
    %v477 = vld [vmem:[#allocation8 + $0x1f8] sm:$0xff]
    %v542 = vunpack.c.l.b16 %v414
    %v543 = vunpack.c.h.b16 %v414
    %v544 = vunpack.c.l.b16 %v415
    %v545 = vunpack.c.h.b16 %v415
    %v546 = vunpack.c.l.b16 %v416
    %v547 = vunpack.c.h.b16 %v416
    %v548 = vunpack.c.l.b16 %v417
    %v549 = vunpack.c.h.b16 %v417
    %v550 = vunpack.c.l.b16 %v418
    %v551 = vunpack.c.h.b16 %v418
    %v552 = vunpack.c.l.b16 %v419
    %v553 = vunpack.c.h.b16 %v419
    %v554 = vunpack.c.l.b16 %v420
    %v555 = vunpack.c.h.b16 %v420
    %v556 = vunpack.c.l.b16 %v421
    %v557 = vunpack.c.h.b16 %v421
    %v558 = vunpack.c.l.b16 %v422
    %v559 = vunpack.c.h.b16 %v422
    %v560 = vunpack.c.l.b16 %v423
    %v561 = vunpack.c.h.b16 %v423
    %v562 = vunpack.c.l.b16 %v424
    %v563 = vunpack.c.h.b16 %v424
    %v564 = vunpack.c.l.b16 %v425
    %v565 = vunpack.c.h.b16 %v425
    %v566 = vunpack.c.l.b16 %v426
    %v567 = vunpack.c.h.b16 %v426
    %v568 = vunpack.c.l.b16 %v427
    %v569 = vunpack.c.h.b16 %v427
    %v570 = vunpack.c.l.b16 %v428
    %v571 = vunpack.c.h.b16 %v428
    %v572 = vunpack.c.l.b16 %v429
    %v573 = vunpack.c.h.b16 %v429
    %v574 = vunpack.c.l.b16 %v430
    %v575 = vunpack.c.h.b16 %v430
    %v576 = vunpack.c.l.b16 %v431
    %v577 = vunpack.c.h.b16 %v431
    %v578 = vunpack.c.l.b16 %v432
    %v579 = vunpack.c.h.b16 %v432
    %v580 = vunpack.c.l.b16 %v433
    %v581 = vunpack.c.h.b16 %v433
    %v582 = vunpack.c.l.b16 %v434
    %v583 = vunpack.c.h.b16 %v434
    %v584 = vunpack.c.l.b16 %v435
    %v585 = vunpack.c.h.b16 %v435
    %v586 = vunpack.c.l.b16 %v436
    %v587 = vunpack.c.h.b16 %v436
    %v588 = vunpack.c.l.b16 %v437
    %v589 = vunpack.c.h.b16 %v437
    %v590 = vunpack.c.l.b16 %v438
    %v591 = vunpack.c.h.b16 %v438
    %v592 = vunpack.c.l.b16 %v439
    %v593 = vunpack.c.h.b16 %v439
    %v594 = vunpack.c.l.b16 %v440
    %v595 = vunpack.c.h.b16 %v440
    %v596 = vunpack.c.l.b16 %v441
    %v597 = vunpack.c.h.b16 %v441
    %v598 = vunpack.c.l.b16 %v442
    %v599 = vunpack.c.h.b16 %v442
    %v600 = vunpack.c.l.b16 %v443
    %v601 = vunpack.c.h.b16 %v443
    %v602 = vunpack.c.l.b16 %v444
    %v603 = vunpack.c.h.b16 %v444
    %v604 = vunpack.c.l.b16 %v445
    %v605 = vunpack.c.h.b16 %v445
    %v606 = vunpack.c.l.b16 %v446
    %v607 = vunpack.c.h.b16 %v446
    %v608 = vunpack.c.l.b16 %v447
    %v609 = vunpack.c.h.b16 %v447
    %v610 = vunpack.c.l.b16 %v448
    %v611 = vunpack.c.h.b16 %v448
    %v612 = vunpack.c.l.b16 %v449
    %v613 = vunpack.c.h.b16 %v449
    %v614 = vunpack.c.l.b16 %v450
    %v615 = vunpack.c.h.b16 %v450
    %v616 = vunpack.c.l.b16 %v451
    %v617 = vunpack.c.h.b16 %v451
    %v618 = vunpack.c.l.b16 %v452
    %v619 = vunpack.c.h.b16 %v452
    %v620 = vunpack.c.l.b16 %v453
    %v621 = vunpack.c.h.b16 %v453
    %v622 = vunpack.c.l.b16 %v454
    %v623 = vunpack.c.h.b16 %v454
    %v624 = vunpack.c.l.b16 %v455
    %v625 = vunpack.c.h.b16 %v455
    %v626 = vunpack.c.l.b16 %v456
    %v627 = vunpack.c.h.b16 %v456
    %v628 = vunpack.c.l.b16 %v457
    %v629 = vunpack.c.h.b16 %v457
    %v630 = vunpack.c.l.b16 %v458
    %v631 = vunpack.c.h.b16 %v458
    %v632 = vunpack.c.l.b16 %v459
    %v633 = vunpack.c.h.b16 %v459
    %v634 = vunpack.c.l.b16 %v460
    %v635 = vunpack.c.h.b16 %v460
    %v636 = vunpack.c.l.b16 %v461
    %v637 = vunpack.c.h.b16 %v461
    %v638 = vunpack.c.l.b16 %v462
    %v639 = vunpack.c.h.b16 %v462
    %v640 = vunpack.c.l.b16 %v463
    %v641 = vunpack.c.h.b16 %v463
    %v642 = vunpack.c.l.b16 %v464
    %v643 = vunpack.c.h.b16 %v464
    %v644 = vunpack.c.l.b16 %v465
    %v645 = vunpack.c.h.b16 %v465
    %v646 = vunpack.c.l.b16 %v466
    %v647 = vunpack.c.h.b16 %v466
    %v648 = vunpack.c.l.b16 %v467
    %v649 = vunpack.c.h.b16 %v467
    %v650 = vunpack.c.l.b16 %v468
    %v651 = vunpack.c.h.b16 %v468
    %v652 = vunpack.c.l.b16 %v469
    %v653 = vunpack.c.h.b16 %v469
    %v654 = vunpack.c.l.b16 %v470
    %v655 = vunpack.c.h.b16 %v470
    %v656 = vunpack.c.l.b16 %v471
    %v657 = vunpack.c.h.b16 %v471
    %v658 = vunpack.c.l.b16 %v472
    %v659 = vunpack.c.h.b16 %v472
    %v660 = vunpack.c.l.b16 %v473
    %v661 = vunpack.c.h.b16 %v473
    %v662 = vunpack.c.l.b16 %v474
    %v663 = vunpack.c.h.b16 %v474
    %v664 = vunpack.c.l.b16 %v475
    %v665 = vunpack.c.h.b16 %v475
    %v666 = vunpack.c.l.b16 %v476
    %v667 = vunpack.c.h.b16 %v476
    %v668 = vunpack.c.l.b16 %v477
    %v669 = vunpack.c.h.b16 %v477
    %v670 = vpack.c.b16 %v544, %v542
    %v671 = vpack.c.b16 %v545, %v543
    %v672 = vpack.c.b16 %v548, %v546
    %v673 = vpack.c.b16 %v549, %v547
    %v674 = vpack.c.b16 %v552, %v550
    %v675 = vpack.c.b16 %v553, %v551
    %v676 = vpack.c.b16 %v556, %v554
    %v677 = vpack.c.b16 %v557, %v555
    %v678 = vpack.c.b16 %v560, %v558
    %v679 = vpack.c.b16 %v561, %v559
    %v680 = vpack.c.b16 %v564, %v562
    %v681 = vpack.c.b16 %v565, %v563
    %v682 = vpack.c.b16 %v568, %v566
    %v683 = vpack.c.b16 %v569, %v567
    %v684 = vpack.c.b16 %v572, %v570
    %v685 = vpack.c.b16 %v573, %v571
    %v686 = vpack.c.b16 %v576, %v574
    %v687 = vpack.c.b16 %v577, %v575
    %v688 = vpack.c.b16 %v580, %v578
    %v689 = vpack.c.b16 %v581, %v579
    %v690 = vpack.c.b16 %v584, %v582
    %v691 = vpack.c.b16 %v585, %v583
    %v692 = vpack.c.b16 %v588, %v586
    %v693 = vpack.c.b16 %v589, %v587
    %v694 = vpack.c.b16 %v592, %v590
    %v695 = vpack.c.b16 %v593, %v591
    %v696 = vpack.c.b16 %v596, %v594
    %v697 = vpack.c.b16 %v597, %v595
    %v698 = vpack.c.b16 %v600, %v598
    %v699 = vpack.c.b16 %v601, %v599
    %v700 = vpack.c.b16 %v604, %v602
    %v701 = vpack.c.b16 %v605, %v603
    %v702 = vpack.c.b16 %v608, %v606
    %v703 = vpack.c.b16 %v609, %v607
    %v704 = vpack.c.b16 %v612, %v610
    %v705 = vpack.c.b16 %v613, %v611
    %v706 = vpack.c.b16 %v616, %v614
    %v707 = vpack.c.b16 %v617, %v615
    %v708 = vpack.c.b16 %v620, %v618
    %v709 = vpack.c.b16 %v621, %v619
    %v710 = vpack.c.b16 %v624, %v622
    %v711 = vpack.c.b16 %v625, %v623
    %v712 = vpack.c.b16 %v628, %v626
    %v713 = vpack.c.b16 %v629, %v627
    %v714 = vpack.c.b16 %v632, %v630
    %v715 = vpack.c.b16 %v633, %v631
    %v716 = vpack.c.b16 %v636, %v634
    %v717 = vpack.c.b16 %v637, %v635
    %v718 = vpack.c.b16 %v640, %v638
    %v719 = vpack.c.b16 %v641, %v639
    %v720 = vpack.c.b16 %v644, %v642
    %v721 = vpack.c.b16 %v645, %v643
    %v722 = vpack.c.b16 %v648, %v646
    %v723 = vpack.c.b16 %v649, %v647
    %v724 = vpack.c.b16 %v652, %v650
    %v725 = vpack.c.b16 %v653, %v651
    %v726 = vpack.c.b16 %v656, %v654
    %v727 = vpack.c.b16 %v657, %v655
    %v728 = vpack.c.b16 %v660, %v658
    %v729 = vpack.c.b16 %v661, %v659
    %v730 = vpack.c.b16 %v664, %v662
    %v731 = vpack.c.b16 %v665, %v663
    %v732 = vpack.c.b16 %v668, %v666
    %v733 = vpack.c.b16 %v669, %v667
    %798 = vmatprep.subr.bf16.mxu0 %v671
    %799 = vmatpush1.bf16.msra.mxu0 %v670
    %800 = vmatprep.subr.bf16.mxu0 %v673
    %801 = vmatpush1.bf16.msra.mxu0 %v672
    %802 = vmatprep.subr.bf16.mxu0 %v675
    %803 = vmatpush1.bf16.msra.mxu0 %v674
    %804 = vmatprep.subr.bf16.mxu0 %v677
    %805 = vmatpush1.bf16.msra.mxu0 %v676
    %806 = vmatprep.subr.bf16.mxu0 %v679
    %807 = vmatpush1.bf16.msra.mxu0 %v678
    %808 = vmatprep.subr.bf16.mxu0 %v681
    %809 = vmatpush1.bf16.msra.mxu0 %v680
    %810 = vmatprep.subr.bf16.mxu0 %v683
    %811 = vmatpush1.bf16.msra.mxu0 %v682
    %812 = vmatprep.subr.bf16.mxu0 %v685
    %813 = vmatpush1.bf16.msra.mxu0 %v684
    %814 = vmatprep.subr.bf16.mxu0 %v687
    %815 = vmatpush1.bf16.msra.mxu0 %v686
    %816 = vmatprep.subr.bf16.mxu0 %v689
    %817 = vmatpush1.bf16.msra.mxu0 %v688
    %818 = vmatprep.subr.bf16.mxu0 %v691
    %819 = vmatpush1.bf16.msra.mxu0 %v690
    %820 = vmatprep.subr.bf16.mxu0 %v693
    %821 = vmatpush1.bf16.msra.mxu0 %v692
    %822 = vmatprep.subr.bf16.mxu0 %v695
    %823 = vmatpush1.bf16.msra.mxu0 %v694
    %824 = vmatprep.subr.bf16.mxu0 %v697
    %825 = vmatpush1.bf16.msra.mxu0 %v696
    %826 = vmatprep.subr.bf16.mxu0 %v699
    %827 = vmatpush1.bf16.msra.mxu0 %v698
    %828 = vmatprep.subr.bf16.mxu0 %v701
    %829 = vmatpush1.bf16.msra.mxu0 %v700
    %830 = vmatprep.mubr.bf16.mxu0 %v411
    %831 = vmatmul.mubr.bf16.gmra.mrb[0].mxu0 %v410
    %v832 = vpop.f32.mrb[0].mxu0
    %v833 = vadd.f32 0.0, %v832
    %v834 = vpop.f32.mrb[0].mxu0
    %v835 = vadd.f32 0.0, %v834
    %v836 = vpop.f32.mrb[0].mxu0
    %v837 = vpop.f32.mrb[0].mxu0
    %838 = vdwg.mxu0
    %839 = vmatprep.subr.bf16.mxu0 %v703
    %840 = vmatpush1.bf16.msra.mxu0 %v702
    %841 = vmatprep.subr.bf16.mxu0 %v705
    %842 = vmatpush1.bf16.msra.mxu0 %v704
    %843 = vmatprep.subr.bf16.mxu0 %v707
    %844 = vmatpush1.bf16.msra.mxu0 %v706
    %845 = vmatprep.subr.bf16.mxu0 %v709
    %846 = vmatpush1.bf16.msra.mxu0 %v708
    %847 = vmatprep.subr.bf16.mxu0 %v711
    %848 = vmatpush1.bf16.msra.mxu0 %v710
    %849 = vmatprep.subr.bf16.mxu0 %v713
    %850 = vmatpush1.bf16.msra.mxu0 %v712
    %851 = vmatprep.subr.bf16.mxu0 %v715
    %852 = vmatpush1.bf16.msra.mxu0 %v714
    %853 = vmatprep.subr.bf16.mxu0 %v717
    %854 = vmatpush1.bf16.msra.mxu0 %v716
    %855 = vmatprep.subr.bf16.mxu0 %v719
    %856 = vmatpush1.bf16.msra.mxu0 %v718
    %857 = vmatprep.subr.bf16.mxu0 %v721
    %858 = vmatpush1.bf16.msra.mxu0 %v720
    %859 = vmatprep.subr.bf16.mxu0 %v723
    %860 = vmatpush1.bf16.msra.mxu0 %v722
    %861 = vmatprep.subr.bf16.mxu0 %v725
    %862 = vmatpush1.bf16.msra.mxu0 %v724
    %863 = vmatprep.subr.bf16.mxu0 %v727
    %864 = vmatpush1.bf16.msra.mxu0 %v726
    %865 = vmatprep.subr.bf16.mxu0 %v729
    %866 = vmatpush1.bf16.msra.mxu0 %v728
    %867 = vmatprep.subr.bf16.mxu0 %v731
    %868 = vmatpush1.bf16.msra.mxu0 %v730
    %869 = vmatprep.subr.bf16.mxu0 %v733
    %870 = vmatpush1.bf16.msra.mxu0 %v732
    %871 = vmatprep.mubr.bf16.mxu0 %v413
    %872 = vmatmul.mubr.bf16.gmra.mrb[0].mxu0 %v412
    %v873 = vpop.f32.mrb[0].mxu0
    %v874 = vadd.f32 %v833, %v873
    %v875 = vpop.f32.mrb[0].mxu0
    %v876 = vadd.f32 %v835, %v875
    %v877 = vpop.f32.mrb[0].mxu0
    %v878 = vpop.f32.mrb[0].mxu0
    %879 = vdwg.mxu0
    %v880 = vld [vmem:[%s4] ss:$2 sm:$0x3]
    %s881 = scalar_lea.vmem %s4, 1
    %v882 = vld [vmem:[%s881] ss:$2 sm:$0x3]
    %v883 = vrot.slane %v874, 4
    %v884 = vadd.f32 %v874, %v883
    %v885 = vrot.slane %v884, 2
    %v886 = vadd.f32 %v884, %v885
    %v887 = vrot.slane %v886, 1
    %v888 = vadd.f32 %v886, %v887
    %v889 = vrot.slane %v876, 4
    %v890 = vadd.f32 %v876, %v889
    %v891 = vrot.slane %v890, 2
    %v892 = vadd.f32 %v890, %v891
    %v893 = vrot.slane %v892, 1
    %v894 = vadd.f32 %v892, %v893
    %v895 = vmul.f32 %v888, %v303
    %v896 = vmul.f32 %v894, %v303
    %v897 = vsub.f32 %v874, %v895
    %v898 = vsub.f32 %v876, %v896
    %v899 = vmul.f32 %v897, %v897
    %v900 = vmul.f32 %v898, %v898
    %v901 = vrot.slane %v899, 4
    %v902 = vadd.f32 %v899, %v901
    %v903 = vrot.slane %v902, 2
    %v904 = vadd.f32 %v902, %v903
    %v905 = vrot.slane %v904, 1
    %v906 = vadd.f32 %v904, %v905
    %v907 = vrot.slane %v900, 4
    %v908 = vadd.f32 %v900, %v907
    %v909 = vrot.slane %v908, 2
    %v910 = vadd.f32 %v908, %v909
    %v911 = vrot.slane %v910, 1
    %v912 = vadd.f32 %v910, %v911
    %v913 = vmul.f32 %v906, %v303
    %v914 = vmul.f32 %v912, %v303
    %v915 = vadd.f32 %v913, 1e-05
    %v916 = vadd.f32 %v914, 1e-05
    %v917 = vrsqrt.pop %v915
    %v918 = vrsqrt.pop %v916
    %v919 = vmul.f32 %v897, %v917
    %v920 = vmul.f32 %v898, %v918
    %v922 = vlaneseq
    %v923 = vshrl.u32 %v922, 7
    %v924 = vsub.s32 0, %v923
    %v925 = vrot.slane %v880, %v924
    %v926 = vlaneseq
    %v927 = vshrl.u32 %v926, 7
    %v928 = vsub.s32 1, %v927
    %v929 = vrot.slane %v880, %v928
    %v932 = vmul.f32 %v919, %v925
    %v933 = vmul.f32 %v920, %v929
    %v935 = vlaneseq
    %v936 = vshrl.u32 %v935, 7
    %v937 = vsub.s32 0, %v936
    %v938 = vrot.slane %v882, %v937
    %v939 = vlaneseq
    %v940 = vshrl.u32 %v939, 7
    %v941 = vsub.s32 1, %v940
    %v942 = vrot.slane %v882, %v941
    %v945 = vadd.f32 %v932, %v938
    %v946 = vadd.f32 %v933, %v942
    %v947 = vmax.f32 %v945, 0.0
    %v948 = vmax.f32 %v946, 0.0
    %v949 = vpack.c.bf16 %v947, %v947
    %v950 = vpack.c.bf16 %v948, %v948
    %v951 = vld [vmem:[#allocation10] sm:$0xf]
    %v952 = vld [vmem:[#allocation10 + $0x4] sm:$0xf]
    %v953 = vld [vmem:[#allocation10 + $0x8] sm:$0xf]
    %v954 = vld [vmem:[#allocation10 + $0xc] sm:$0xf]
    %v955 = vld [vmem:[#allocation10 + $0x10] sm:$0xf]
    %v956 = vld [vmem:[#allocation10 + $0x14] sm:$0xf]
    %v957 = vld [vmem:[#allocation10 + $0x18] sm:$0xf]
    %v958 = vld [vmem:[#allocation10 + $0x1c] sm:$0xf]
    %v959 = vld [vmem:[#allocation10 + $0x20] sm:$0xf]
    %v960 = vld [vmem:[#allocation10 + $0x24] sm:$0xf]
    %v961 = vld [vmem:[#allocation10 + $0x28] sm:$0xf]
    %v962 = vld [vmem:[#allocation10 + $0x2c] sm:$0xf]
    %v963 = vld [vmem:[#allocation10 + $0x30] sm:$0xf]
    %v964 = vld [vmem:[#allocation10 + $0x34] sm:$0xf]
    %v965 = vld [vmem:[#allocation10 + $0x38] sm:$0xf]
    %v966 = vld [vmem:[#allocation10 + $0x3c] sm:$0xf]
    %v967 = vld [vmem:[#allocation10 + $0x40] sm:$0xf]
    %v968 = vld [vmem:[#allocation10 + $0x44] sm:$0xf]
    %v969 = vld [vmem:[#allocation10 + $0x48] sm:$0xf]
    %v970 = vld [vmem:[#allocation10 + $0x4c] sm:$0xf]
    %v971 = vld [vmem:[#allocation10 + $0x50] sm:$0xf]
    %v972 = vld [vmem:[#allocation10 + $0x54] sm:$0xf]
    %v973 = vld [vmem:[#allocation10 + $0x58] sm:$0xf]
    %v974 = vld [vmem:[#allocation10 + $0x5c] sm:$0xf]
    %v975 = vld [vmem:[#allocation10 + $0x60] sm:$0xf]
    %v976 = vld [vmem:[#allocation10 + $0x64] sm:$0xf]
    %v977 = vld [vmem:[#allocation10 + $0x68] sm:$0xf]
    %v978 = vld [vmem:[#allocation10 + $0x6c] sm:$0xf]
    %v979 = vld [vmem:[#allocation10 + $0x70] sm:$0xf]
    %v980 = vld [vmem:[#allocation10 + $0x74] sm:$0xf]
    %v981 = vld [vmem:[#allocation10 + $0x78] sm:$0xf]
    %v982 = vld [vmem:[#allocation10 + $0x7c] sm:$0xf]
    %v983 = vld [vmem:[%s6] sm:$0x1]
    %v985 = vlaneseq
    %v986 = vshrl.u32 %v985, 7
    %v987 = vsub.s32 0, %v986
    %v988 = vrot.slane %v983, %v987
    %v1022 = vunpack.c.l.b16 %v951
    %v1023 = vunpack.c.l.b16 %v952
    %v1024 = vunpack.c.l.b16 %v953
    %v1025 = vunpack.c.l.b16 %v954
    %v1026 = vunpack.c.l.b16 %v955
    %v1027 = vunpack.c.l.b16 %v956
    %v1028 = vunpack.c.l.b16 %v957
    %v1029 = vunpack.c.l.b16 %v958
    %v1030 = vunpack.c.l.b16 %v959
    %v1031 = vunpack.c.l.b16 %v960
    %v1032 = vunpack.c.l.b16 %v961
    %v1033 = vunpack.c.l.b16 %v962
    %v1034 = vunpack.c.l.b16 %v963
    %v1035 = vunpack.c.l.b16 %v964
    %v1036 = vunpack.c.l.b16 %v965
    %v1037 = vunpack.c.l.b16 %v966
    %v1038 = vunpack.c.l.b16 %v967
    %v1039 = vunpack.c.l.b16 %v968
    %v1040 = vunpack.c.l.b16 %v969
    %v1041 = vunpack.c.l.b16 %v970
    %v1042 = vunpack.c.l.b16 %v971
    %v1043 = vunpack.c.l.b16 %v972
    %v1044 = vunpack.c.l.b16 %v973
    %v1045 = vunpack.c.l.b16 %v974
    %v1046 = vunpack.c.l.b16 %v975
    %v1047 = vunpack.c.l.b16 %v976
    %v1048 = vunpack.c.l.b16 %v977
    %v1049 = vunpack.c.l.b16 %v978
    %v1050 = vunpack.c.l.b16 %v979
    %v1051 = vunpack.c.l.b16 %v980
    %v1052 = vunpack.c.l.b16 %v981
    %v1053 = vunpack.c.l.b16 %v982
    %v1054 = vpack.c.b16 %v1023, %v1022
    %v1055 = vpack.c.b16 %v1025, %v1024
    %v1056 = vpack.c.b16 %v1027, %v1026
    %v1057 = vpack.c.b16 %v1029, %v1028
    %v1058 = vpack.c.b16 %v1031, %v1030
    %v1059 = vpack.c.b16 %v1033, %v1032
    %v1060 = vpack.c.b16 %v1035, %v1034
    %v1061 = vpack.c.b16 %v1037, %v1036
    %v1062 = vpack.c.b16 %v1039, %v1038
    %v1063 = vpack.c.b16 %v1041, %v1040
    %v1064 = vpack.c.b16 %v1043, %v1042
    %v1065 = vpack.c.b16 %v1045, %v1044
    %v1066 = vpack.c.b16 %v1047, %v1046
    %v1067 = vpack.c.b16 %v1049, %v1048
    %v1068 = vpack.c.b16 %v1051, %v1050
    %v1069 = vpack.c.b16 %v1053, %v1052
    %1086 = vmatprep.subr.bf16.mxu0 0
    %1087 = vmatpush1.bf16.msra.mxu0 %v1054
    %1088 = vmatprep.subr.bf16.mxu0 0
    %1089 = vmatpush1.bf16.msra.mxu0 %v1055
    %1090 = vmatprep.subr.bf16.mxu0 0
    %1091 = vmatpush1.bf16.msra.mxu0 %v1056
    %1092 = vmatprep.subr.bf16.mxu0 0
    %1093 = vmatpush1.bf16.msra.mxu0 %v1057
    %1094 = vmatprep.subr.bf16.mxu0 0
    %1095 = vmatpush1.bf16.msra.mxu0 %v1058
    %1096 = vmatprep.subr.bf16.mxu0 0
    %1097 = vmatpush1.bf16.msra.mxu0 %v1059
    %1098 = vmatprep.subr.bf16.mxu0 0
    %1099 = vmatpush1.bf16.msra.mxu0 %v1060
    %1100 = vmatprep.subr.bf16.mxu0 0
    %1101 = vmatpush1.bf16.msra.mxu0 %v1061
    %1102 = vmatprep.subr.bf16.mxu0 0
    %1103 = vmatpush1.bf16.msra.mxu0 %v1062
    %1104 = vmatprep.subr.bf16.mxu0 0
    %1105 = vmatpush1.bf16.msra.mxu0 %v1063
    %1106 = vmatprep.subr.bf16.mxu0 0
    %1107 = vmatpush1.bf16.msra.mxu0 %v1064
    %1108 = vmatprep.subr.bf16.mxu0 0
    %1109 = vmatpush1.bf16.msra.mxu0 %v1065
    %1110 = vmatprep.subr.bf16.mxu0 0
    %1111 = vmatpush1.bf16.msra.mxu0 %v1066
    %1112 = vmatprep.subr.bf16.mxu0 0
    %1113 = vmatpush1.bf16.msra.mxu0 %v1067
    %1114 = vmatprep.subr.bf16.mxu0 0
    %1115 = vmatpush1.bf16.msra.mxu0 %v1068
    %1116 = vmatprep.subr.bf16.mxu0 0
    %1117 = vmatpush1.bf16.msra.mxu0 %v1069
    %1118 = vmatprep.mubr.bf16.mxu0 %v950
    %1119 = vmatmul.mubr.bf16.gmra.mrb[0].mxu0 %v949
    %v1120 = vpop.f32.mrb[0].mxu0
    %v1121 = vadd.f32 %v988, %v1120
    %v1122 = vpop.f32.mrb[0].mxu0
    %v1123 = vpop.f32.mrb[0].mxu0
    %v1124 = vpop.f32.mrb[0].mxu0
    %1125 = vdwg.mxu0
    %v1126 = vmul.f32 %v1121, %v1121
    %1127 = vadd.xlane.f32.xlu0 %v1126
    %v1128 = vpop.xlane.xlu0 %1127
    %v1129 = vmax.f32 %v1128, 1e-24
    %v1130 = vrsqrt.pop %v1129
    %v1131 = vmul.f32 %v1121, %v1130
    %1132 = vst [vmem:[#allocation11] sm:$0xff] %v1131
    // Predicated region
    $region50: #{tpu_custom_call.1} parent=1 // pred_check
      _
    $region51: #{tpu_custom_call.1} parent=1 // pred_check_branch
      %1134 = sbr.rel (0) target = $region53
    $region52: #{tpu_custom_call.1} parent=1 // pred_region
      %s1136 = ssub.s32 128, 128
      %1137 = vsyncadd [#allocation4], %s1136
      %s1139 = sshll.u32 [#allocation11], 4
      %s1140 = int_to_ptr.vmem [resolvable:$true] %s1139
      %1142 = dma.vmem_to_hbm [thread:$0]  %s1140, 128, %s7, [#allocation4]
    $region53: #{tpu_custom_call.1} parent=1 // pred_fallthru
      _
    // Predicated region
    $region54: #{tpu_custom_call.1} parent=1 // pred_check
      _
    $region55: #{tpu_custom_call.1} parent=1 // pred_check_branch
      %1144 = sbr.rel (0) target = $region57
    $region56: #{tpu_custom_call.1} parent=1 // pred_region
      %1145 = dma.done [#allocation4], 128
    $region57: #{tpu_custom_call.1} parent=1 // pred_fallthru
      _
    %1146 = vsyncpa [#allocation3], 1
    %1147 = vsyncpa [#allocation6], 1
    %1148 = vsyncpa [#allocation9], 1
    %1149 = vsyncpa [#allocation4], 1

</llo_original>
